<compile_context>
chip_gen: v6e
topology: v6e:2x2x1
jax: 0.10.0
libtpu: 0.0.40
codegen_flags: <defaults>
</compile_context>

<pallas_src>
import functools
import math

import jax
import jax.numpy as jnp
from jax.experimental import pallas as pl
from jax.experimental.pallas import tpu as pltpu


def _round_up(x: int, m: int) -> int:
    return ((x + m - 1) // m) * m


def _context_gate_kernel(x_ref, w_ref, o_ref, *, y_start, y_size, fuse_exp):
    # x_ref: (bm, K_pad) fused activations, w_ref: (K_pad, bn) fused weights.
    x = x_ref[...]
    if fuse_exp:
        # Apply exp only on the Yt column range [y_start, y_start + y_size).
        # Lane-wise select (VPU) + exp (EUP) -> no cross-lane relayout.
        col = jax.lax.broadcasted_iota(jnp.int32, x.shape, 1)
        in_y = (col >= y_start) & (col < y_start + y_size)
        x = jnp.where(in_y, jnp.exp(x), x)
    # Single MXU matmul with f32 accumulation; sigmoid in f32.
    g = jnp.dot(x, w_ref[...], preferred_element_type=jnp.float32)
    o_ref[...] = jax.nn.sigmoid(g).astype(o_ref.dtype)


def context_gate_forward(St, Yt, Ct, Ws, Wy, Wc, *, bm=None, bn=None,
                         compute_dtype=None):
    """Pallas implementation of context_gate.forward.

    compute_dtype: optionally cast operands (e.g. jnp.bfloat16) for the MXU on
    v6e/v7x; accumulation / exp / sigmoid stay in float32 either way.
    """
    B = St.shape[0]
    de_h, en_h = Ws.shape
    emb = Wy.shape[0]
    assert Yt.shape == (B, emb)
    assert Ct.shape == (B, en_h)
    assert Wy.shape == (emb, en_h) and Wc.shape == (en_h, en_h)

    out_dtype = St.dtype
    cdt = jnp.dtype(compute_dtype) if compute_dtype is not None else jnp.dtype(out_dtype)
    # Keep exp on the f32 path: fuse it in-kernel when compute dtype is f32,
    # otherwise precompute exp(Yt) in f32 in the wrapper (v5e has no bf16 VPU/EUP).
    fuse_exp = (cdt == jnp.float32)
    Yt_in = Yt if fuse_exp else jnp.exp(Yt.astype(jnp.float32))

    # ---- tile sizes --------------------------------------------------------
    # Batch tile: multiple of 8 (f32 sublane), capped at 256 so large B gives a
    # multi-step, pipelined (and megacore-shardable) grid.
    if bm is None:
        bm = min(_round_up(B, 8), 256)
    bm = _round_up(bm, 8)
    B_pad = _round_up(B, bm)

    # en_hidden (N) tile: multiple of 128 lanes, capped so weight tiles stay
    # well inside v7x's 64 MiB VMEM / v5e's scoped default.
    if bn is None:
        bn = min(_round_up(en_h, 128), 1024)
    bn = _round_up(bn, 128)
    N_pad = _round_up(en_h, bn)

    # Fused K dimension, padded to the MXU-friendly multiple of 128
    # (e.g. 64 + 32 + 128 = 224 -> 256).  Zero padding keeps the math exact.
    K = de_h + emb + en_h
    K_pad = _round_up(K, 128)

    # ---- build fused, padded operands (plain XLA ops) ----------------------
    X = jnp.concatenate(
        [St.astype(cdt), Yt_in.astype(cdt), Ct.astype(cdt)], axis=1)
    X = jnp.pad(X, ((0, B_pad - B), (0, K_pad - K)))
    W = jnp.concatenate([Ws, Wy, Wc], axis=0).astype(cdt)
    W = jnp.pad(W, ((0, K_pad - K), (0, N_pad - en_h)))

    grid = (B_pad // bm, N_pad // bn)

    kernel = functools.partial(
        _context_gate_kernel, y_start=de_h, y_size=emb, fuse_exp=fuse_exp)

    # VMEM budget: double-buffered X / W / out tiles (+ headroom), bounded so
    # it also fits v7x's 64 MiB physical VMEM.
    isz = max(jnp.dtype(cdt).itemsize, jnp.dtype(out_dtype).itemsize)
    need = 2 * (bm * K_pad + K_pad * bn + bm * bn) * isz
    vmem_limit = int(min(max(2 * need + (4 << 20), 32 << 20), 64 << 20))

    out = pl.pallas_call(
        kernel,
        out_shape=jax.ShapeDtypeStruct((B_pad, N_pad), out_dtype),
        grid_spec=pltpu.PrefetchScalarGridSpec(
            num_scalar_prefetch=0,
            grid=grid,
            in_specs=[
                pl.BlockSpec((bm, K_pad), lambda i, j: (i, 0)),   # fused activations
                pl.BlockSpec((K_pad, bn), lambda i, j: (0, j)),   # fused weights
            ],
            out_specs=pl.BlockSpec((bm, bn), lambda i, j: (i, j)),
        ),
        compiler_params=pltpu.CompilerParams(
            dimension_semantics=("parallel", "parallel"),
            vmem_limit_bytes=vmem_limit),
    )(X, W)

    # Strip batch / en_hidden padding.
    return out[:B, :en_h]


def xavier_uniform(key, fan_in, fan_out, dtype=jnp.float32):
    # Matches torch.nn.init.xavier_uniform_ (gain=1).
    limit = math.sqrt(6.0 / (fan_in + fan_out))
    return jax.random.uniform(key, (fan_in, fan_out), dtype=dtype,
                              minval=-limit, maxval=limit)


def _reference(St, Yt, Ct, Ws, Wy, Wc):
    return jax.nn.sigmoid(St @ Ws + jnp.exp(Yt) @ Wy + Ct @ Wc)


if __name__ == "__main__":
    key = jax.random.PRNGKey(0)

    # Case 1: aligned small shapes consistent with the module's forward.
    batch, embed_size, en_hidden_size, de_hidden_size = 8, 32, 128, 64
    k_ws, k_wy, k_wc, k_st, k_yt, k_ct, key = jax.random.split(key, 7)
    Ws = xavier_uniform(k_ws, de_hidden_size, en_hidden_size)
    Wy = xavier_uniform(k_wy, embed_size, en_hidden_size)
    Wc = xavier_uniform(k_wc, en_hidden_size, en_hidden_size)
    St = jax.random.normal(k_st, (batch, de_hidden_size), dtype=jnp.float32)
    Yt = jax.random.normal(k_yt, (batch, embed_size), dtype=jnp.float32)
    Ct = jax.random.normal(k_ct, (batch, en_hidden_size), dtype=jnp.float32)

    out = jax.block_until_ready(context_gate_forward(St, Yt, Ct, Ws, Wy, Wc))
    ref = _reference(St, Yt, Ct, Ws, Wy, Wc)
    assert out.shape == (batch, en_hidden_size)
    assert jnp.allclose(out, ref, atol=1e-5, rtol=1e-5)

    # Case 2: ragged batch / non-128 en_hidden to exercise the padding path.
    batch2, embed2, en_h2, de_h2 = 5, 24, 96, 40
    k_ws, k_wy, k_wc, k_st, k_yt, k_ct, key = jax.random.split(key, 7)
    Ws2 = xavier_uniform(k_ws, de_h2, en_h2)
    Wy2 = xavier_uniform(k_wy, embed2, en_h2)
    Wc2 = xavier_uniform(k_wc, en_h2, en_h2)
    St2 = jax.random.normal(k_st, (batch2, de_h2), dtype=jnp.float32)
    Yt2 = jax.random.normal(k_yt, (batch2, embed2), dtype=jnp.float32)
    Ct2 = jax.random.normal(k_ct, (batch2, en_h2), dtype=jnp.float32)

    out2 = jax.block_until_ready(
        context_gate_forward(St2, Yt2, Ct2, Ws2, Wy2, Wc2))
    ref2 = _reference(St2, Yt2, Ct2, Ws2, Wy2, Wc2)
    assert out2.shape == (batch2, en_h2)
    assert jnp.allclose(out2, ref2, atol=1e-5, rtol=1e-5)

    print("KERNEL_OK")
</pallas_src>

<mosaic_0001>
module attributes {stable_mosaic.version = 11 : i64} {
  func.func @_context_gate_kernel(%arg0: i32, %arg1: i32, %arg2: memref<8x256xf32, #tpu.memory_space<vmem>>, %arg3: memref<256x128xf32, #tpu.memory_space<vmem>>, %arg4: memref<8x128xf32, #tpu.memory_space<vmem>>) attributes {dimension_semantics = [#tpu.dimension_semantics<parallel>, #tpu.dimension_semantics<parallel>], iteration_bounds = array<i64: 1, 1>, scalar_prefetch = 0 : i64, scratch_operands = 0 : i64, tpu.core_type = #tpu.core_type<tc>, window_params = [{transform_indices = @transform_0, window_bounds = array<i64: 8, 256>}, {transform_indices = @transform_1, window_bounds = array<i64: 256, 128>}, {transform_indices = @transform_2, window_bounds = array<i64: 8, 128>}]} {
    %c0 = arith.constant 0 : index
    %c0_0 = arith.constant 0 : index
    %0 = vector.load %arg2[%c0, %c0_0] : memref<8x256xf32, #tpu.memory_space<vmem>>, vector<8x256xf32>
    %1 = tpu.iota {dimensions = array<i32: 1>} : vector<8x256xi32>
    %c64_i32 = arith.constant 64 : i32
    %2 = vector.broadcast %c64_i32 : i32 to vector<8x256xi32>
    %3 = arith.cmpi sge, %1, %2 : vector<8x256xi32>
    %c96_i32 = arith.constant 96 : i32
    %4 = vector.broadcast %c96_i32 : i32 to vector<8x256xi32>
    %5 = arith.cmpi slt, %1, %4 : vector<8x256xi32>
    %6 = arith.andi %3, %5 : vector<8x256xi1>
    %7 = math.exp %0 : vector<8x256xf32>
    %8 = arith.select %6, %7, %0 : vector<8x256xi1>, vector<8x256xf32>
    %c0_1 = arith.constant 0 : index
    %c0_2 = arith.constant 0 : index
    %9 = vector.load %arg3[%c0_1, %c0_2] : memref<256x128xf32, #tpu.memory_space<vmem>>, vector<256x128xf32>
    %cst = arith.constant dense<0.000000e+00> : vector<8x128xf32>
    %10 = tpu.matmul %8, %9, %cst {dimension_numbers = #tpu.dot_dimension_numbers<[1], [0], [0], [1], [0, 0, 1, 1], [], []>} : vector<8x256xf32>, vector<256x128xf32>, vector<8x128xf32> -> vector<8x128xf32>
    %11 = arith.negf %10 : vector<8x128xf32>
    %12 = math.exp %11 : vector<8x128xf32>
    %cst_3 = arith.constant 1.000000e+00 : f32
    %13 = vector.broadcast %cst_3 : f32 to vector<8x128xf32>
    %14 = arith.addf %13, %12 : vector<8x128xf32>
    %15 = arith.divf %13, %14 : vector<8x128xf32>
    %c0_4 = arith.constant 0 : index
    %c0_5 = arith.constant 0 : index
    %16 = vector.load %arg4[%c0_4, %c0_5] : memref<8x128xf32, #tpu.memory_space<vmem>>, vector<8x128xf32>
    tpu.vector_store %arg4[%c0_4, %c0_5], %15 {strides = array<i32>} : memref<8x128xf32, #tpu.memory_space<vmem>>, vector<8x128xf32>,
    return
  }
  func.func @transform_0(%arg0: i32, %arg1: i32) -> (i32, i32) {
    %c0_i32 = arith.constant 0 : i32
    %c0_i32_0 = arith.constant 0 : i32
    return %arg0, %c0_i32 : i32, i32
  }
  func.func @transform_1(%arg0: i32, %arg1: i32) -> (i32, i32) {
    %c0_i32 = arith.constant 0 : i32
    %c0_i32_0 = arith.constant 0 : i32
    return %c0_i32, %arg1 : i32, i32
  }
  func.func @transform_2(%arg0: i32, %arg1: i32) -> (i32, i32) {
    %c0_i32 = arith.constant 0 : i32
    return %arg0, %arg1 : i32, i32
  }
}

</mosaic_0001>

<llo_original>
// kernel: tpu_custom_call.1
$region0: #{tpu_custom_call.1}
  #allocation0 [shape = 'u32[]', space=smem, size = 0x4, offset = 0x4, fixed_abs, tag = 'smem constant byte address 0x4 - core index']
  #allocation1 [shape = 'u32[144,128]{1,0:T(1,128)}', space=vmem, size = 0x12000, scoped, tag = 'internal scratch']
  %s0 = inlined_call_operand.hbm [shape: f32[8,256], index: 0, kind: input, shape index: {}]
  %s1 = inlined_call_operand.hbm [shape: f32[256,128], index: 1, kind: input, shape index: {}]
  %s2 = inlined_call_operand.hbm [shape: f32[8,128], index: 2, kind: output, shape index: {}]
  %s3 = sld [smem:[#allocation0]]
  $region26: #{tpu_custom_call.1} parent=0
    _
  %s5 = ssub.s32 1, %s3
  %s6 = scalar_select 0, %s5, %s3
  $region1: #{tpu_custom_call.1} parent=0
    #allocation2 [shape = 'u8[8192]{0}', space=vmem, size = 0x2000, scoped, tag = 'input window, operand 0, single buffered']
    #allocation3 [shape = 's32[1]{0}', space=sflag, size = 0x4, scoped, tag = 'scoped memory for tpu_custom_call.1']
    #allocation4 [shape = 's32[1]{0}', space=sflag, size = 0x4, scoped, tag = 'scoped memory for tpu_custom_call.1']
    #allocation5 [shape = 'u8[131072]{0}', space=vmem, size = 0x20000, scoped, tag = 'input window, operand 1, single buffered']
    #allocation6 [shape = 's32[1]{0}', space=sflag, size = 0x4, scoped, tag = 'scoped memory for tpu_custom_call.1']
    #allocation7 [shape = 'u8[4096]{0}', space=vmem, size = 0x1000, scoped, tag = 'output window, operand 0, single buffered']
    %7 = vsyncpa [#allocation3], 0
    %8 = vsyncpa [#allocation6], 0
    %9 = vsyncpa [#allocation4], 0
    // Predicated region
    $region2: #{tpu_custom_call.1} parent=1 // pred_check
      _
    $region3: #{tpu_custom_call.1} parent=1 // pred_check_branch
      %11 = sbr.rel (0) target = $region5
    $region4: #{tpu_custom_call.1} parent=1 // pred_region
      %s13 = ssub.s32 256, 256
      %14 = vsyncadd [#allocation3], %s13
      %s16 = sshll.u32 [#allocation2], 4
      %s17 = int_to_ptr.vmem [resolvable:$true] %s16
      %19 = dma.hbm_to_vmem [thread:$0]  %s0, 256, %s17, [#allocation3]
    $region5: #{tpu_custom_call.1} parent=1 // pred_fallthru
      _
    // Predicated region
    $region6: #{tpu_custom_call.1} parent=1 // pred_check
      _
    $region7: #{tpu_custom_call.1} parent=1 // pred_check_branch
      %21 = sbr.rel (0) target = $region9
    $region8: #{tpu_custom_call.1} parent=1 // pred_region
      %s23 = ssub.s32 4096, 4096
      %24 = vsyncadd [#allocation6], %s23
      %s25 = sshll.u32 [#allocation5], 4
      %s26 = int_to_ptr.vmem [resolvable:$true] %s25
      %31 = dma.hbm_to_vmem [thread:$0]  %s1, 4096, %s26, [#allocation6], 128, 128, 8
    $region9: #{tpu_custom_call.1} parent=1 // pred_fallthru
      _
    // Predicated region
    $region10: #{tpu_custom_call.1} parent=1 // pred_check
      _
    $region11: #{tpu_custom_call.1} parent=1 // pred_check_branch
      %33 = sbr.rel (0) target = $region13
    $region12: #{tpu_custom_call.1} parent=1 // pred_region
      %34 = dma.done [#allocation3], 256
    $region13: #{tpu_custom_call.1} parent=1 // pred_fallthru
      _
    // Predicated region
    $region14: #{tpu_custom_call.1} parent=1 // pred_check
      _
    $region15: #{tpu_custom_call.1} parent=1 // pred_check_branch
      %36 = sbr.rel (0) target = $region17
    $region16: #{tpu_custom_call.1} parent=1 // pred_region
      %37 = dma.done [#allocation6], 4096
    $region17: #{tpu_custom_call.1} parent=1 // pred_fallthru
      _
    %v38 = vld [vmem:[#allocation2] sm:$0xff]
    %v39 = vld [vmem:[#allocation2 + $0x8] sm:$0xff]
    %v40 = vlaneseq
    %v41 = vand.u32 %v40, 127
    %v42 = vadd.s32 %v41, 128
    %vm43 = vcmp.ge.s32.totalorder %v41, 64
    %vm44 = vcmp.ge.s32.totalorder %v42, 64
    %vm45 = vcmp.lt.s32.totalorder %v41, 96
    %vm46 = vcmp.lt.s32.totalorder %v42, 96
    %vm47 = vmand %vm43, %vm45
    %vm48 = vmand %vm44, %vm46
    %v49 = vmul.f32 %v38, 1.442695
    %v50 = vpow.pop %v49
    %v51 = vmul.f32 %v39, 1.442695
    %v52 = vpow.pop %v51
    %v53 = vsel %vm47, %v50, %v38
    %v54 = vsel %vm48, %v52, %v39
    %v55 = vld [vmem:[#allocation5] sm:$0xff]
    %v56 = vld [vmem:[#allocation5 + $0x8] sm:$0xff]
    %v57 = vld [vmem:[#allocation5 + $0x10] sm:$0xff]
    %v58 = vld [vmem:[#allocation5 + $0x18] sm:$0xff]
    %v59 = vld [vmem:[#allocation5 + $0x20] sm:$0xff]
    %v60 = vld [vmem:[#allocation5 + $0x28] sm:$0xff]
    %v61 = vld [vmem:[#allocation5 + $0x30] sm:$0xff]
    %v62 = vld [vmem:[#allocation5 + $0x38] sm:$0xff]
    %v63 = vld [vmem:[#allocation5 + $0x40] sm:$0xff]
    %v64 = vld [vmem:[#allocation5 + $0x48] sm:$0xff]
    %v65 = vld [vmem:[#allocation5 + $0x50] sm:$0xff]
    %v66 = vld [vmem:[#allocation5 + $0x58] sm:$0xff]
    %v67 = vld [vmem:[#allocation5 + $0x60] sm:$0xff]
    %v68 = vld [vmem:[#allocation5 + $0x68] sm:$0xff]
    %v69 = vld [vmem:[#allocation5 + $0x70] sm:$0xff]
    %v70 = vld [vmem:[#allocation5 + $0x78] sm:$0xff]
    %v71 = vld [vmem:[#allocation5 + $0x80] sm:$0xff]
    %v72 = vld [vmem:[#allocation5 + $0x88] sm:$0xff]
    %v73 = vld [vmem:[#allocation5 + $0x90] sm:$0xff]
    %v74 = vld [vmem:[#allocation5 + $0x98] sm:$0xff]
    %v75 = vld [vmem:[#allocation5 + $0xa0] sm:$0xff]
    %v76 = vld [vmem:[#allocation5 + $0xa8] sm:$0xff]
    %v77 = vld [vmem:[#allocation5 + $0xb0] sm:$0xff]
    %v78 = vld [vmem:[#allocation5 + $0xb8] sm:$0xff]
    %v79 = vld [vmem:[#allocation5 + $0xc0] sm:$0xff]
    %v80 = vld [vmem:[#allocation5 + $0xc8] sm:$0xff]
    %v81 = vld [vmem:[#allocation5 + $0xd0] sm:$0xff]
    %v82 = vld [vmem:[#allocation5 + $0xd8] sm:$0xff]
    %v83 = vld [vmem:[#allocation5 + $0xe0] sm:$0xff]
    %v84 = vld [vmem:[#allocation5 + $0xe8] sm:$0xff]
    %v85 = vld [vmem:[#allocation5 + $0xf0] sm:$0xff]
    %v86 = vld [vmem:[#allocation5 + $0xf8] sm:$0xff]
    %87 = vmatprep.subr.mxu0 0.0
    %88 = vmatpush1.msra.mxu0 %v70
    %89 = vmatprep.subr.mxu0 0.0
    %90 = vmatpush1.msra.mxu0 %v69
    %91 = vmatprep.subr.mxu0 0.0
    %92 = vmatpush1.msra.mxu0 %v68
    %93 = vmatprep.subr.mxu0 0.0
    %94 = vmatpush1.msra.mxu0 %v67
    %95 = vmatprep.subr.mxu0 0.0
    %96 = vmatpush1.msra.mxu0 %v66
    %97 = vmatprep.subr.mxu0 0.0
    %98 = vmatpush1.msra.mxu0 %v65
    %99 = vmatprep.subr.mxu0 0.0
    %100 = vmatpush1.msra.mxu0 %v64
    %101 = vmatprep.subr.mxu0 0.0
    %102 = vmatpush1.msra.mxu0 %v63
    %103 = vmatprep.subr.mxu0 0.0
    %104 = vmatpush1.msra.mxu0 %v62
    %105 = vmatprep.subr.mxu0 0.0
    %106 = vmatpush1.msra.mxu0 %v61
    %107 = vmatprep.subr.mxu0 0.0
    %108 = vmatpush1.msra.mxu0 %v60
    %109 = vmatprep.subr.mxu0 0.0
    %110 = vmatpush1.msra.mxu0 %v59
    %111 = vmatprep.subr.mxu0 0.0
    %112 = vmatpush1.msra.mxu0 %v58
    %113 = vmatprep.subr.mxu0 0.0
    %114 = vmatpush1.msra.mxu0 %v57
    %115 = vmatprep.subr.mxu0 0.0
    %116 = vmatpush1.msra.mxu0 %v56
    %117 = vmatprep.subr.mxu0 0.0
    %118 = vmatpush1.msra.mxu0 %v55
    %119 = vmatprep.subr.mxu0 0.0
    %120 = vmatpush2.msra.mxu0 %v86
    %121 = vmatprep.subr.mxu0 0.0
    %122 = vmatpush2.msra.mxu0 %v85
    %123 = vmatprep.subr.mxu0 0.0
    %124 = vmatpush2.msra.mxu0 %v84
    %125 = vmatprep.subr.mxu0 0.0
    %126 = vmatpush2.msra.mxu0 %v83
    %127 = vmatprep.subr.mxu0 0.0
    %128 = vmatpush2.msra.mxu0 %v82
    %129 = vmatprep.subr.mxu0 0.0
    %130 = vmatpush2.msra.mxu0 %v81
    %131 = vmatprep.subr.mxu0 0.0
    %132 = vmatpush2.msra.mxu0 %v80
    %133 = vmatprep.subr.mxu0 0.0
    %134 = vmatpush2.msra.mxu0 %v79
    %135 = vmatprep.subr.mxu0 0.0
    %136 = vmatpush2.msra.mxu0 %v78
    %137 = vmatprep.subr.mxu0 0.0
    %138 = vmatpush2.msra.mxu0 %v77
    %139 = vmatprep.subr.mxu0 0.0
    %140 = vmatpush2.msra.mxu0 %v76
    %141 = vmatprep.subr.mxu0 0.0
    %142 = vmatpush2.msra.mxu0 %v75
    %143 = vmatprep.subr.mxu0 0.0
    %144 = vmatpush2.msra.mxu0 %v74
    %145 = vmatprep.subr.mxu0 0.0
    %146 = vmatpush2.msra.mxu0 %v73
    %147 = vmatprep.subr.mxu0 0.0
    %148 = vmatpush2.msra.mxu0 %v72
    %149 = vmatprep.subr.mxu0 0.0
    %150 = vmatpush2.msra.mxu0 %v71
    %151 = vmatprep.mubr.f32.mxu0 %v54
    %152 = vmatmul.mubr.f32.gmra.mxu0 %v53
    %v153 = vpop.f32.mrf.mxu0
    %v154 = vadd.f32 0.0, %v153
    %v155 = vpop.f32.mrf.mxu0
    %156 = vdwg.mxu0
    %v157 = vxor.u32 %v154, 2147483648
    %v158 = vmul.f32 %v157, 1.442695
    %v159 = vpow.pop %v158
    %v160 = vadd.f32 %v159, 1.0
    %v161 = vrcp.pop %v160
    %v162 = vmul.f32 1.0, %v161
    %163 = vst [vmem:[#allocation7] sm:$0xff] %v162
    // Predicated region
    $region18: #{tpu_custom_call.1} parent=1 // pred_check
      _
    $region19: #{tpu_custom_call.1} parent=1 // pred_check_branch
      %165 = sbr.rel (0) target = $region21
    $region20: #{tpu_custom_call.1} parent=1 // pred_region
      %s167 = ssub.s32 128, 128
      %168 = vsyncadd [#allocation4], %s167
      %s170 = sshll.u32 [#allocation7], 4
      %s171 = int_to_ptr.vmem [resolvable:$true] %s170
      %173 = dma.vmem_to_hbm [thread:$0]  %s171, 128, %s2, [#allocation4]
    $region21: #{tpu_custom_call.1} parent=1 // pred_fallthru
      _
    // Predicated region
    $region22: #{tpu_custom_call.1} parent=1 // pred_check
      _
    $region23: #{tpu_custom_call.1} parent=1 // pred_check_branch
      %175 = sbr.rel (0) target = $region25
    $region24: #{tpu_custom_call.1} parent=1 // pred_region
      %176 = dma.done [#allocation4], 128
    $region25: #{tpu_custom_call.1} parent=1 // pred_fallthru
      _
    %177 = vsyncpa [#allocation3], 1
    %178 = vsyncpa [#allocation6], 1
    %179 = vsyncpa [#allocation4], 1

</llo_original>
